<compile_context>
chip_gen: v7x
topology: tpu7x:2x2x1
jax: 0.10.0
libtpu: 0.0.40
codegen_flags: <defaults>
</compile_context>

<pallas_src>
import functools

import jax
import jax.numpy as jnp
from jax.experimental import pallas as pl
from jax.experimental.pallas import tpu as pltpu


def _act_kernel(mean_ref, x_ref, act_ref):
    """Elementwise pre-pass for one (batch, row-tile):
       act = softsign(exp(2.5*x - mean)) == sigmoid(2.5*x - mean)."""
    z = x_ref[0].astype(jnp.float32) * 2.5 - mean_ref[0, 0]
    # sigmoid(z): exp on the EUP, exact reciprocal (Newton-refined).
    a = pl.reciprocal(1.0 + jnp.exp(-z), approx=False)
    act_ref[0] = a.astype(act_ref.dtype)


def _gram_kernel(a_ref, bt_ref, o_ref, *, dot_precision):
    """One (b, i, j) output tile: sqrt(act_rows_i @ act_rows_j^T).
    a_ref:  (1, tm, D)   activated LHS rows
    bt_ref: (1, D, tn)   activated RHS rows, pre-transposed -> plain NN matmul
    """
    y = jnp.dot(a_ref[0], bt_ref[0],
                preferred_element_type=jnp.float32, precision=dot_precision)
    o_ref[0] = jnp.sqrt(y)


def pt_module_forward(x: jax.Array, *, dot_dtype=jnp.bfloat16) -> jax.Array:
    """Pallas implementation of PtModule.forward for a 3-D input (B, S, D).

    dot_dtype: dtype of the MXU operands (bf16 default for v6e/v7x throughput;
               pass jnp.float32 for ~1e-5-level agreement with the reference).
    """
    assert x.ndim == 3, "this kernel implements the 3-D (matmul) path"
    B, S, D = x.shape
    xf = x.astype(jnp.float32)
    dot_dtype = jnp.dtype(dot_dtype)
    itemsize = dot_dtype.itemsize

    # --- Global mean of the scaled input: tiny mem-bound pre-pass (XLA). ---
    scaled_mean = (2.5 * jnp.mean(xf)).reshape(1, 1).astype(jnp.float32)

    # --- VMEM budget: ~3/4 of physical (96 MiB v5e/v6e, 48 MiB v7x). ---
    try:
        vmem_cap = int(pltpu.get_tpu_info().vmem_capacity_bytes)
    except Exception:
        vmem_cap = 64 * 1024 * 1024
    vmem_limit = min(vmem_cap * 3 // 4, 100 * 1024 * 1024)

    # --- Tile selection (MXU / lane friendly; partial edge blocks are OK). ---
    if S < 128:
        tm = tn = S                      # full-extent blocks satisfy (8,128) rule
    else:
        tn = 256 if S >= 256 else 128
        tm = tn
        # Bigger LHS row tile -> more reuse of each streamed RHS tile.
        need = ((512 + tn) * D * itemsize + 512 * tn * 4) * 2  # double-buffered
        if S >= 512 and need < vmem_limit // 2:
            tm = 512

    # --- Pre-pass 1: activation, computed once (mem-bound). ---
    act = pl.pallas_call(
        _act_kernel,
        out_shape=jax.ShapeDtypeStruct((B, S, D), dot_dtype),
        grid=(B, pl.cdiv(S, tm)),
        in_specs=[
            pl.BlockSpec(memory_space=pltpu.MemorySpace.SMEM),   # scalar mean
            pl.BlockSpec((1, tm, D), lambda b, i: (b, i, 0)),
        ],
        out_specs=pl.BlockSpec((1, tm, D), lambda b, i: (b, i, 0)),
        compiler_params=pltpu.CompilerParams(
            dimension_semantics=("parallel", "parallel"),
            vmem_limit_bytes=vmem_limit,
        ),
        cost_estimate=pl.CostEstimate(
            flops=4 * B * S * D,
            transcendentals=B * S * D,
            bytes_accessed=4 * B * S * D + itemsize * B * S * D,
        ),
    )(scaled_mean, xf)

    # --- Pre-pass 2: RHS in (B, D, S) layout so the Gram tile is a plain
    #     [tm, D] @ [D, tn] NN matmul (no per-(i, j) XLU transpose).  Cheap
    #     XLA layout pass over the already-activated (narrow-dtype) array. ---
    act_t = jnp.swapaxes(act, -1, -2)

    # --- Gram kernel: one lane-dense output tile per grid step. ---
    gi, gj = pl.cdiv(S, tm), pl.cdiv(S, tn)
    dot_precision = (jax.lax.Precision.HIGHEST if dot_dtype == jnp.dtype(jnp.float32)
                     else jax.lax.Precision.DEFAULT)
    out = pl.pallas_call(
        functools.partial(_gram_kernel, dot_precision=dot_precision),
        out_shape=jax.ShapeDtypeStruct((B, S, S), jnp.float32),
        grid=(B, gi, gj),
        in_specs=[
            # LHS row tile: constant across innermost j -> not re-fetched.
            pl.BlockSpec((1, tm, D), lambda b, i, j: (b, i, 0)),
            # RHS column tile from the pre-transposed layout.
            pl.BlockSpec((1, D, tn), lambda b, i, j: (b, 0, j)),
        ],
        out_specs=pl.BlockSpec((1, tm, tn), lambda b, i, j: (b, i, j)),
        compiler_params=pltpu.CompilerParams(
            dimension_semantics=("parallel", "parallel", "parallel"),
            vmem_limit_bytes=vmem_limit,
        ),
        cost_estimate=pl.CostEstimate(
            flops=2 * B * S * S * D,
            transcendentals=B * S * S,           # sqrt
            bytes_accessed=itemsize * B * S * D * (1 + gi) + 4 * B * S * S,
        ),
    )(act, act_t)
    return out


def _reference(x: jax.Array) -> jax.Array:
    """Pure-JAX reference mirroring the PyTorch forward exactly."""
    x = x.astype(jnp.float32)
    x = x * 2.5
    x = x - jnp.mean(x)
    x = jnp.exp(x)
    x = x / (jnp.abs(x) + 1.0)
    x = jnp.einsum("bsd,btd->bst", x, x, precision=jax.lax.Precision.HIGHEST)
    return jnp.sqrt(x)


if __name__ == "__main__":
    # Small deterministic 3-D input (module-consistent): batch=2, seq=8, hidden=32.
    # f32 dot path to hold the tight tolerance.
    x_small = jax.random.normal(jax.random.PRNGKey(0), (2, 8, 32), dtype=jnp.float32)
    out_small = jax.block_until_ready(
        pt_module_forward(x_small, dot_dtype=jnp.float32))
    ref_small = _reference(x_small)
    assert out_small.shape == (2, 8, 8), out_small.shape
    assert jnp.allclose(out_small, ref_small, atol=1e-5, rtol=1e-5), (
        float(jnp.max(jnp.abs(out_small - ref_small))))

    # Ragged path: S=200 -> 128-wide tiles with partial edge blocks (no pad /
    # slice round trips), default bf16 MXU operands -> loose tolerance.
    x_big = jax.random.normal(jax.random.PRNGKey(1), (2, 200, 64), dtype=jnp.float32)
    out_big = jax.block_until_ready(pt_module_forward(x_big))
    ref_big = _reference(x_big)
    assert out_big.shape == (2, 200, 200), out_big.shape
    assert jnp.allclose(out_big, ref_big, atol=2e-2, rtol=2e-2), (
        float(jnp.max(jnp.abs(out_big - ref_big))))

    print("KERNEL_OK")
</pallas_src>

<mosaic_0001>
module attributes {stable_mosaic.version = 11 : i64} {
  func.func @_act_kernel(%arg0: i32, %arg1: i32, %arg2: memref<1x1xf32, #tpu.memory_space<smem>>, %arg3: memref<1x8x32xf32, #tpu.memory_space<vmem>>, %arg4: memref<1x8x32xf32, #tpu.memory_space<vmem>>) attributes {dimension_semantics = [#tpu.dimension_semantics<parallel>, #tpu.dimension_semantics<parallel>], iteration_bounds = array<i64: 2, 1>, scalar_prefetch = 0 : i64, scratch_operands = 0 : i64, tpu.core_type = #tpu.core_type<tc>, window_params = [{transform_indices = @transform_0, window_bounds = array<i64: 1, 1>}, {transform_indices = @transform_1, window_bounds = array<i64: 1, 8, 32>}, {transform_indices = @transform_2, window_bounds = array<i64: 1, 8, 32>}]} {
    %c0 = arith.constant 0 : index
    %c0_0 = arith.constant 0 : index
    %c0_1 = arith.constant 0 : index
    %0 = vector.load %arg3[%c0, %c0_0, %c0_1] : memref<1x8x32xf32, #tpu.memory_space<vmem>>, vector<1x8x32xf32>
    %1 = vector.shape_cast %0 : vector<1x8x32xf32> to vector<8x32xf32>
    %cst = arith.constant 2.500000e+00 : f32
    %2 = vector.broadcast %cst : f32 to vector<8x32xf32>
    %3 = arith.mulf %1, %2 : vector<8x32xf32>
    %c0_2 = arith.constant 0 : index
    %c0_3 = arith.constant 0 : index
    %4 = memref.load %arg2[%c0_2, %c0_3] : memref<1x1xf32, #tpu.memory_space<smem>>
    %5 = vector.broadcast %4 : f32 to vector<8x32xf32>
    %6 = arith.subf %3, %5 : vector<8x32xf32>
    %cst_4 = arith.constant 0.000000e+00 : f32
    %7 = vector.broadcast %cst_4 : f32 to vector<8x32xf32>
    %8 = arith.subf %7, %6 : vector<8x32xf32>
    %9 = math.exp %8 : vector<8x32xf32>
    %cst_5 = arith.constant 1.000000e+00 : f32
    %10 = vector.broadcast %cst_5 : f32 to vector<8x32xf32>
    %11 = arith.addf %10, %9 : vector<8x32xf32>
    %12 = tpu.reciprocal %11 : vector<8x32xf32> -> vector<8x32xf32>
    %c0_6 = arith.constant 0 : index
    %c0_7 = arith.constant 0 : index
    %c0_8 = arith.constant 0 : index
    %13 = vector.load %arg4[%c0_6, %c0_7, %c0_8] : memref<1x8x32xf32, #tpu.memory_space<vmem>>, vector<1x8x32xf32>
    %14 = vector.shape_cast %13 : vector<1x8x32xf32> to vector<8x32xf32>
    %15 = vector.shape_cast %12 : vector<8x32xf32> to vector<1x8x32xf32>
    tpu.vector_store %arg4[%c0_6, %c0_7, %c0_8], %15 {strides = array<i32>} : memref<1x8x32xf32, #tpu.memory_space<vmem>>, vector<1x8x32xf32>,
    return
  }
  func.func @transform_0(%arg0: i32, %arg1: i32) -> (i32, i32) {
    %c0_i32 = arith.constant 0 : i32
    %c0_i32_0 = arith.constant 0 : i32
    %c0_i32_1 = arith.constant 0 : i32
    return %c0_i32, %c0_i32_0 : i32, i32
  }
  func.func @transform_1(%arg0: i32, %arg1: i32) -> (i32, i32, i32) {
    %c0_i32 = arith.constant 0 : i32
    %c0_i32_0 = arith.constant 0 : i32
    return %arg0, %arg1, %c0_i32 : i32, i32, i32
  }
  func.func @transform_2(%arg0: i32, %arg1: i32) -> (i32, i32, i32) {
    %c0_i32 = arith.constant 0 : i32
    %c0_i32_0 = arith.constant 0 : i32
    return %arg0, %arg1, %c0_i32 : i32, i32, i32
  }
}

</mosaic_0001>

<llo_original>
// kernel: tpu_custom_call.1
$region0: #{tpu_custom_call.1}
  #allocation0 [shape = 'u32[]', space=smem, size = 0x4, offset = 0x4, fixed_abs, tag = 'smem constant byte address 0x4 - core index']
  #allocation1 [shape = 'u32[144,128]{1,0:T(1,128)}', space=vmem, size = 0x12000, scoped, tag = 'internal scratch']
  #allocation2 [shape = 'f32[1,1]{1,0:T(1,128)S(6)}', space=smem, size = 0x200, scoped, tag = 'scoped memory for tpu_custom_call.1']
  %s0 = inlined_call_operand.<no memory space> [shape: f32[1,1], index: 0, kind: input, shape index: {}]
  %s1 = inlined_call_operand.hbm [shape: f32[2,8,32], index: 1, kind: input, shape index: {}]
  %s2 = inlined_call_operand.hbm [shape: f32[2,8,32], index: 2, kind: output, shape index: {}]
  %s3 = sld [smem:[#allocation0]]
  $region45: #{tpu_custom_call.1} parent=0
    _
  %s5 = ssub.s32 1, %s3
  %s6 = scalar_select 0, %s5, %s3
  %7 = sst [smem:[#allocation2]] %s0
  $region1: #{tpu_custom_call.1} parent=0
    #allocation3 [shape = 'u8[8192]{0}', space=vmem, size = 0x2000, scoped, tag = 'input window, operand 1']
    #allocation4 [shape = 's32[2]{0}', space=sflag, size = 0x8, scoped, tag = 'scoped memory for tpu_custom_call.1']
    #allocation5 [shape = 's32[2]{0}', space=sflag, size = 0x8, scoped, tag = 'scoped memory for tpu_custom_call.1']
    #allocation6 [shape = 'u8[8192]{0}', space=vmem, size = 0x2000, scoped, tag = 'output window, operand 0']
    %8 = vsyncpa [#allocation4], 0
    %s9 = scalar_lea.sflag [#allocation4], 1
    %10 = vsyncpa %s9, 0
    %11 = vsyncpa [#allocation5], 0
    %s12 = scalar_lea.sflag [#allocation5], 1
    %13 = vsyncpa %s12, 0
    loop: start=0, step=1, limit=4
    $region2: #{tpu_custom_call.1} parent=1 // loop_pre_header
      _
    $region3: #{tpu_custom_call.1} parent=1 // loop_header
      %s15 = sphi 0, %s19
      %p16 = scmp.ge.s32.totalorder %s15, 4
      %s22 = sphi 0, %s34
      %s23 = sphi 0, %s30
      %s24 = sphi 0, %s22
      %s25 = sphi 0, %s23
      %s26 = sphi 0, %s24
      %s27 = sphi 0, %s25
      %s35 = sphi 0, %s35
      %s37 = sphi 0, %s35
      %s38 = sphi 0, %s37
      %s52 = sphi 0, %s38
      %s60 = sphi 0, %s62
      %s63 = sphi 0, %s60
      %s64 = sphi 0, %s63
      %s80 = sphi 0, %s64
      %s88 = sphi 0, %s90
      %s91 = sphi 0, %s88
      %s92 = sphi 0, %s91
      %s108 = sphi 0, %s92
    $region4: #{tpu_custom_call.1} parent=1 // loop_header_branch
      %18 = sbr.rel (%p16) target = $region8
    $region5: #{tpu_custom_call.1} parent=1 // loop_body
      %s20 = ssub.s32 %s15, 1
      %s21 = ssub.s32 %s15, 2
      %s28 = sadd.s32 1, %s23
      %p29 = scmp.ge.s32.totalorder %s28, 1
      %s30 = scalar_select %p29, 0, %s28
      %s31 = sadd.s32 1, %s22
      %s32 = scalar_select %p29, %s31, %s22
      %p33 = scmp.ge.s32.totalorder %s32, 2
      %s34 = scalar_select %p33, 0, %s32
      %s36 = sadd.s32 %s35, 1
      %p39 = scmp.eq.s32.totalorder %s15, 1
      %p40 = scmp.ne.s32.totalorder %s35, %s37
      %p41 = scmp.eq.s32.totalorder %s15, 0
      %p42 = por %p40, %p41
      %p43 = scmp.ne.s32.totalorder %s35, %s37
      %p44 = scmp.eq.s32.totalorder %s20, 1
      %p45 = por %p43, %p44
      %p46 = scmp.ne.s32.totalorder %s37, %s38
      %p47 = scmp.eq.s32.totalorder %s20, 0
      %p48 = por %p46, %p47
      %p49 = scmp.ne.s32.totalorder %s37, %s38
      %p50 = scmp.eq.s32.totalorder %s21, 1
      %p51 = por %p49, %p50
      %p53 = scmp.ne.s32.totalorder %s38, %s52
      %p54 = scmp.eq.s32.totalorder %s21, 0
      %p55 = por %p53, %p54
      %s56 = ssub.s32 %s22, %s34
      %s57 = ssub.s32 %s23, %s30
      %s58 = sor.u32 %s56, %s57
      %p59 = scmp.eq.s32.totalorder %s58, 0
      %s61 = sadd.s32 %s60, 1
      %s62 = scalar_select %p59, %s60, %s61
      %p65 = pneg %p59
      %p66 = scmp.eq.s32.totalorder %s15, 1
      %p67 = por %p65, %p66
      %p68 = scmp.ne.s32.totalorder %s60, %s63
      %p69 = scmp.eq.s32.totalorder %s15, 0
      %p70 = por %p68, %p69
      %p71 = scmp.ne.s32.totalorder %s60, %s63
      %p72 = scmp.eq.s32.totalorder %s20, 1
      %p73 = por %p71, %p72
      %p74 = scmp.ne.s32.totalorder %s63, %s64
      %p75 = scmp.eq.s32.totalorder %s20, 0
      %p76 = por %p74, %p75
      %p77 = scmp.ne.s32.totalorder %s63, %s64
      %p78 = scmp.eq.s32.totalorder %s21, 1
      %p79 = por %p77, %p78
      %p81 = scmp.ne.s32.totalorder %s64, %s80
      %p82 = scmp.eq.s32.totalorder %s21, 0
      %p83 = por %p81, %p82
      %s84 = ssub.s32 %s22, %s34
      %s85 = ssub.s32 %s23, %s30
      %s86 = sor.u32 %s84, %s85
      %p87 = scmp.eq.s32.totalorder %s86, 0
      %s89 = sadd.s32 %s88, 1
      %s90 = scalar_select %p87, %s88, %s89
      %p93 = pneg %p87
      %p94 = scmp.eq.s32.totalorder %s15, 1
      %p95 = por %p93, %p94
      %p96 = scmp.ne.s32.totalorder %s88, %s91
      %p97 = scmp.eq.s32.totalorder %s15, 0
      %p98 = por %p96, %p97
      %p99 = scmp.ne.s32.totalorder %s88, %s91
      %p100 = scmp.eq.s32.totalorder %s20, 1
      %p101 = por %p99, %p100
      %p102 = scmp.ne.s32.totalorder %s91, %s92
      %p103 = scmp.eq.s32.totalorder %s20, 0
      %p104 = por %p102, %p103
      %p105 = scmp.ne.s32.totalorder %s91, %s92
      %p106 = scmp.eq.s32.totalorder %s21, 1
      %p107 = por %p105, %p106
      %p109 = scmp.ne.s32.totalorder %s92, %s108
      %p110 = scmp.eq.s32.totalorder %s21, 0
      %p111 = por %p109, %p110
      %p112 = scmp.le.s32.totalorder 1, %s15
      %p113 = scmp.lt.s32.totalorder %s15, 3
      %p114 = pnand %p112, %p113
      %p115 = pneg %p114
      // Predicated region
      $region9: #{tpu_custom_call.1} parent=5 // pred_check
        _
      $region10: #{tpu_custom_call.1} parent=5 // pred_check_branch
        %117 = sbr.rel (%p114) target = $region12
      $region11: #{tpu_custom_call.1} parent=5 // pred_region
        %s118 = ssub.s32 %s15, 1
        // Predicated region
        $region13: #{tpu_custom_call.1} parent=11 // pred_check
          %p119 = pneg %p48
        $region14: #{tpu_custom_call.1} parent=11 // pred_check_branch
          %121 = sbr.rel (%p119) target = $region16
        $region15: #{tpu_custom_call.1} parent=11 // pred_region
          _
        $region16: #{tpu_custom_call.1} parent=11 // pred_fallthru
          _
      $region12: #{tpu_custom_call.1} parent=5 // pred_fallthru
        _
      %p122 = scmp.lt.s32.totalorder %s15, 2
      // Predicated region
      $region17: #{tpu_custom_call.1} parent=5 // pred_check
        %p123 = pneg %p122
      $region18: #{tpu_custom_call.1} parent=5 // pred_check_branch
        %125 = sbr.rel (%p123) target = $region20
      $region19: #{tpu_custom_call.1} parent=5 // pred_region
        // Predicated region
        $region21: #{tpu_custom_call.1} parent=19 // pred_check
          %p126 = pneg %p70
        $region22: #{tpu_custom_call.1} parent=19 // pred_check_branch
          %128 = sbr.rel (%p126) target = $region24
        $region23: #{tpu_custom_call.1} parent=19 // pred_region
          %s129 = sand.u32 %s60, 1
          %s130 = scalar_lea.sflag [#allocation4], %s129
          %s131 = sand.u32 %s60, 1
          %s132 = smul.addr %s131, 8
          %s133 = scalar_lea.vmem [#allocation3], %s132
          %s135 = ssub.s32 128, 128
          %136 = vsyncadd %s130, %s135
          %s137 = sadd.s32 %s23, %s22
          %s138 = smul.addr %s137, 128
          %s139 = scalar_lea.hbm %s1, %s138
          %s141 = sshll.u32 %s133, 4
          %s142 = int_to_ptr.vmem [resolvable:$true] %s141
          %144 = dma.hbm_to_vmem [thread:$0]  %s139, 128, %s142, %s130
        $region24: #{tpu_custom_call.1} parent=19 // pred_fallthru
          _
      $region20: #{tpu_custom_call.1} parent=5 // pred_fallthru
        _
      %p145 = scmp.le.s32.totalorder 1, %s15
      %p146 = scmp.lt.s32.totalorder %s15, 3
      %p147 = pnand %p145, %p146
      %p148 = pneg %p147
      // Predicated region
      $region25: #{tpu_custom_call.1} parent=5 // pred_check
        _
      $region26: #{tpu_custom_call.1} parent=5 // pred_check_branch
        %150 = sbr.rel (%p147) target = $region28
      $region27: #{tpu_custom_call.1} parent=5 // pred_region
        %s151 = ssub.s32 %s15, 1
        %s152 = sand.u32 %s63, 1
        %s153 = scalar_lea.sflag [#allocation4], %s152
        %s154 = sand.u32 %s63, 1
        %s155 = smul.addr %s154, 8
        %s156 = scalar_lea.vmem [#allocation3], %s155
        // Predicated region
        $region29: #{tpu_custom_call.1} parent=27 // pred_check
          %p157 = pneg %p76
        $region30: #{tpu_custom_call.1} parent=27 // pred_check_branch
          %159 = sbr.rel (%p157) target = $region32
        $region31: #{tpu_custom_call.1} parent=27 // pred_region
          %160 = dma.done %s153, 128
        $region32: #{tpu_custom_call.1} parent=27 // pred_fallthru
          _
        %p161 = pneg %p48
        %p162 = pneg %p45
        %s163 = sand.u32 %s63, 1
        %s164 = scalar_lea.sflag [#allocation4], %s163
        %s165 = sand.u32 %s63, 1
        %s166 = smul.addr %s165, 8
        %s167 = scalar_lea.vmem [#allocation3], %s166
        %p168 = pneg %p76
        %p169 = pneg %p73
        %p170 = pneg %p104
        %p171 = pneg %p101
        %s172 = sand.u32 %s91, 1
        %s173 = scalar_lea.sflag [#allocation5], %s172
        %s174 = sand.u32 %s91, 1
        %s175 = smul.addr %s174, 8
        %s176 = scalar_lea.vmem [#allocation6], %s175
        %v177 = vld [vmem:[%s156] sm:$0xff]
        %v178 = vmul.f32 %v177, 2.5
        %s179 = sld [smem:[#allocation2]]
        %v180 = vstv %s179
        %v181 = vsub.f32 %v178, %v180
        %v182 = vsub.f32 0.0, %v181
        %v183 = vmul.f32 %v182, 1.442695
        %v184 = vpow.pop %v183
        %v185 = vadd.f32 %v184, 1.0
        %v186 = vrcp.pop %v185
        %vm187 = vcmask 261120
        %188 = vst.msk [vmem:[%s176] sm:$0xff] %vm187, %v186
        %s189 = sand.u32 %s91, 1
        %s190 = scalar_lea.sflag [#allocation5], %s189
        %s191 = sand.u32 %s91, 1
        %s192 = smul.addr %s191, 8
        %s193 = scalar_lea.vmem [#allocation6], %s192
        // Predicated region
        $region33: #{tpu_custom_call.1} parent=27 // pred_check
          %p194 = pneg %p101
        $region34: #{tpu_custom_call.1} parent=27 // pred_check_branch
          %196 = sbr.rel (%p194) target = $region36
        $region35: #{tpu_custom_call.1} parent=27 // pred_region
          %s198 = ssub.s32 128, 128
          %199 = vsyncadd %s190, %s198
          %s200 = sadd.s32 %s25, %s24
          %s201 = smul.addr %s200, 128
          %s202 = scalar_lea.hbm %s2, %s201
          %s204 = sshll.u32 %s193, 4
          %s205 = int_to_ptr.vmem [resolvable:$true] %s204
          %207 = dma.vmem_to_hbm [thread:$0]  %s205, 128, %s202, %s190
        $region36: #{tpu_custom_call.1} parent=27 // pred_fallthru
          _
      $region28: #{tpu_custom_call.1} parent=5 // pred_fallthru
        _
      %p208 = scmp.le.s32.totalorder 2, %s15
      // Predicated region
      $region37: #{tpu_custom_call.1} parent=5 // pred_check
        %p209 = pneg %p208
      $region38: #{tpu_custom_call.1} parent=5 // pred_check_branch
        %211 = sbr.rel (%p209) target = $region40
      $region39: #{tpu_custom_call.1} parent=5 // pred_region
        %s212 = ssub.s32 %s15, 2
        // Predicated region
        $region41: #{tpu_custom_call.1} parent=39 // pred_check
          %p213 = pneg %p107
        $region42: #{tpu_custom_call.1} parent=39 // pred_check_branch
          %215 = sbr.rel (%p213) target = $region44
        $region43: #{tpu_custom_call.1} parent=39 // pred_region
          %s216 = sand.u32 %s92, 1
          %s217 = scalar_lea.sflag [#allocation5], %s216
          %s218 = sand.u32 %s92, 1
          %s219 = smul.addr %s218, 8
          %s220 = scalar_lea.vmem [#allocation6], %s219
          %221 = dma.done %s217, 128
        $region44: #{tpu_custom_call.1} parent=39 // pred_fallthru
          _
      $region40: #{tpu_custom_call.1} parent=5 // pred_fallthru
        _
    $region6: #{tpu_custom_call.1} parent=1 // loop_footer
      %s19 = sadd.s32 1, %s15
    $region7: #{tpu_custom_call.1} parent=1 // loop_footer_branch
      %14 = sbr.rel target = $region3
    $region8: #{tpu_custom_call.1} parent=1 // loop_exit
      _
    %222 = vsyncpa [#allocation4], 1
    %s223 = scalar_lea.sflag [#allocation4], 1
    %224 = vsyncpa %s223, 1
    %225 = vsyncpa [#allocation5], 1
    %s226 = scalar_lea.sflag [#allocation5], 1
    %227 = vsyncpa %s226, 1

</llo_original>
